<compile_context>
chip_gen: v7x
topology: tpu7x:2x2x1
jax: 0.10.0
libtpu: 0.0.40
codegen_flags: <defaults>
</compile_context>

<pallas_src>
import functools

import jax
import jax.numpy as jnp
from jax.experimental import pallas as pl
from jax.experimental.pallas import tpu as pltpu


# Raised scoped-VMEM limit: above the 16/32 MiB defaults, below v7x's 64 MiB
# physical VMEM so the same setting is safe on v5e/v6e/v7x.
_VMEM_LIMIT_BYTES = 48 * 1024 * 1024


def _round_up(x, m):
    return ((x + m - 1) // m) * m


def _default_tiles():
    """Per-generation (tm, tn, tk) defaults.

    Sized so 2x(x tile) + 2x(W tile) + 2x(out tile) + acc stays well under the
    most constrained chip's VMEM (v7x: 64 MiB physical). ~7.5 MiB at f32 for
    the v6e/v7x choice, less at bf16.
    """
    try:
        kind = jax.devices()[0].device_kind.lower()
    except Exception:  # pragma: no cover - defensive only
        kind = ""
    if "v5 lite" in kind or "v5e" in kind or "v5litepod" in kind:
        # 128x128 MXU, ~0.8 TB/s HBM: 128-aligned tiles, favour M/N reuse.
        return 256, 512, 512
    # v6e / v7x: 256-wide MXU; big K tile to amortize per-step overhead.
    return 256, 512, 1024


# -----------------------------------------------------------------------------
# Kernels
# -----------------------------------------------------------------------------
def _nonlinear_small_kernel(*refs, activation, use_bias):
    """Single-block fused linear: whole x / w_t / out resident in VMEM."""
    if use_bias:
        x_ref, wt_ref, b_ref, o_ref = refs
    else:
        x_ref, wt_ref, o_ref = refs
        b_ref = None
    h = jnp.dot(x_ref[...], wt_ref[...], preferred_element_type=jnp.float32)
    if use_bias:
        h = h + b_ref[...]  # (1, N) broadcasts over rows
    if activation is not None:
        h = activation(h)
    o_ref[...] = h.astype(o_ref.dtype)


def _nonlinear_tiled_kernel(*refs, activation, use_bias):
    """Tiled fused linear.

    Grid = (M//tm, N//tn, K//tk); K is the reduction axis (last, 'arbitrary').
    acc_ref is a VMEM f32 accumulator resident across the K axis. The bias is
    folded into the accumulator init (saves a full-tile VPU add in the
    epilogue); activation + downcast run once on the last K step.
    """
    if use_bias:
        x_ref, wt_ref, b_ref, o_ref, acc_ref = refs
    else:
        x_ref, wt_ref, o_ref, acc_ref = refs
        b_ref = None

    k = pl.program_id(2)

    @pl.when(k == 0)
    def _():
        if use_bias:
            acc_ref[...] = jnp.broadcast_to(
                b_ref[...].astype(jnp.float32), acc_ref.shape
            )
        else:
            acc_ref[...] = jnp.zeros_like(acc_ref)

    acc_ref[...] += jnp.dot(
        x_ref[...], wt_ref[...], preferred_element_type=jnp.float32
    )

    @pl.when(k == pl.num_programs(2) - 1)
    def _():
        h = acc_ref[...]
        if activation is not None:
            h = activation(h)
        o_ref[...] = h.astype(o_ref.dtype)


# -----------------------------------------------------------------------------
# Dispatchers
# -----------------------------------------------------------------------------
def _nonlinear_single_block(x, w_t, bias, activation, use_bias, out_dtype):
    M, K = x.shape
    _, N = w_t.shape

    in_specs = [
        pl.BlockSpec((M, K), lambda i: (0, 0)),
        pl.BlockSpec((K, N), lambda i: (0, 0)),
    ]
    args = [x, w_t]
    if use_bias:
        in_specs.append(pl.BlockSpec((1, N), lambda i: (0, 0)))
        args.append(bias.astype(jnp.float32).reshape(1, N))

    kernel = functools.partial(
        _nonlinear_small_kernel, activation=activation, use_bias=use_bias
    )
    return pl.pallas_call(
        kernel,
        out_shape=jax.ShapeDtypeStruct((M, N), out_dtype),
        grid_spec=pltpu.PrefetchScalarGridSpec(
            num_scalar_prefetch=0,
            grid=(1,),
            in_specs=in_specs,
            out_specs=pl.BlockSpec((M, N), lambda i: (0, 0)),
        ),
        compiler_params=pltpu.CompilerParams(
            dimension_semantics=("arbitrary",),
            vmem_limit_bytes=_VMEM_LIMIT_BYTES,
        ),
    )(*args)


def _nonlinear_tiled(x, w_t, bias, activation, use_bias, out_dtype, tm, tn, tk):
    M, K = x.shape
    _, N = w_t.shape

    # Round tiles to hardware multiples (sublane 8 / lane 128) and clamp to the
    # (rounded-up) problem size so tiny problems don't over-allocate.
    tm = _round_up(min(tm, _round_up(M, 8)), 8)
    tn = _round_up(min(tn, _round_up(N, 128)), 128)
    tk = _round_up(min(tk, _round_up(K, 128)), 128)

    Mp, Np, Kp = _round_up(M, tm), _round_up(N, tn), _round_up(K, tk)
    if (Mp, Kp) != (M, K):
        x = jnp.pad(x, ((0, Mp - M), (0, Kp - K)))
    if (Kp, Np) != (K, N):
        w_t = jnp.pad(w_t, ((0, Kp - K), (0, Np - N)))

    in_specs = [
        pl.BlockSpec((tm, tk), lambda i, j, k: (i, k)),  # x tile
        pl.BlockSpec((tk, tn), lambda i, j, k: (k, j)),  # w_t tile
    ]
    args = [x, w_t]
    if use_bias:
        b = bias.astype(jnp.float32)
        if Np != N:
            b = jnp.pad(b, (0, Np - N))
        in_specs.append(pl.BlockSpec((1, tn), lambda i, j, k: (0, j)))
        args.append(b.reshape(1, Np))

    kernel = functools.partial(
        _nonlinear_tiled_kernel, activation=activation, use_bias=use_bias
    )
    out = pl.pallas_call(
        kernel,
        out_shape=jax.ShapeDtypeStruct((Mp, Np), out_dtype),
        grid_spec=pltpu.PrefetchScalarGridSpec(
            num_scalar_prefetch=0,
            grid=(Mp // tm, Np // tn, Kp // tk),
            in_specs=in_specs,
            out_specs=pl.BlockSpec((tm, tn), lambda i, j, k: (i, j)),
            scratch_shapes=[pltpu.VMEM((tm, tn), jnp.float32)],
        ),
        compiler_params=pltpu.CompilerParams(
            dimension_semantics=("parallel", "parallel", "arbitrary"),
            vmem_limit_bytes=_VMEM_LIMIT_BYTES,
        ),
    )(*args)

    if (Mp, Np) != (M, N):
        out = out[:M, :N]
    return out


def nonlinear_forward(
    x,
    w_t,
    bias=None,
    activation=None,
    *,
    compute_dtype=None,
    tm=None,
    tn=None,
    tk=None,
    single_block_limit_bytes=2 * 1024 * 1024,
):
    """Equivalent of NonLinear.forward: activation(x @ w_t + bias).

    x:    [M, K]  (batch, input_size)
    w_t:  [K, N]  pre-transposed weight (nn.Linear weight is [N, K])
    bias: [N] or None
    compute_dtype: optional (e.g. jnp.bfloat16) matmul input dtype; accumulation
        stays f32 and output keeps x's original dtype.
    """
    M, K = x.shape
    K2, N = w_t.shape
    assert K == K2, f"shape mismatch: x {x.shape} vs w_t {w_t.shape}"
    use_bias = bias is not None
    out_dtype = x.dtype

    if compute_dtype is not None:
        x = x.astype(compute_dtype)
        w_t = w_t.astype(compute_dtype)

    explicit_tiles = not (tm is None and tn is None and tk is None)

    # Fast path: problem fits comfortably in VMEM -> one block, no K loop.
    total_bytes = (
        x.size * x.dtype.itemsize
        + w_t.size * w_t.dtype.itemsize
        + M * N * jnp.dtype(out_dtype).itemsize
        + M * N * 4  # f32 matmul result
    )
    if not explicit_tiles and total_bytes <= single_block_limit_bytes:
        return _nonlinear_single_block(x, w_t, bias, activation, use_bias, out_dtype)

    dtm, dtn, dtk = _default_tiles()
    tm = dtm if tm is None else tm
    tn = dtn if tn is None else tn
    tk = dtk if tk is None else tk
    return _nonlinear_tiled(x, w_t, bias, activation, use_bias, out_dtype, tm, tn, tk)


# -----------------------------------------------------------------------------
# Module mirror
# -----------------------------------------------------------------------------
class NonLinearPallas:
    """Mirror of the PyTorch NonLinear module (Linear + optional activation)."""

    def __init__(self, input_size, output_size, bias=True, activation=None, *,
                 key, compute_dtype=None):
        self.input_size = int(input_size)
        self.output_size = int(output_size)
        self.activation = activation
        self.compute_dtype = compute_dtype
        kw, kb = jax.random.split(key)
        # Deterministic init matching nn.Linear's U(-1/sqrt(in), 1/sqrt(in)).
        bound = 1.0 / (self.input_size ** 0.5)
        self.weight = jax.random.uniform(
            kw, (self.output_size, self.input_size), jnp.float32, -bound, bound
        )
        self.bias = (
            jax.random.uniform(kb, (self.output_size,), jnp.float32, -bound, bound)
            if bias
            else None
        )
        # Pre-transpose (and optionally pre-cast) ONCE so forward never pays a
        # per-call HBM->HBM weight transpose / cast.
        w_t = self.weight.T
        if compute_dtype is not None:
            w_t = w_t.astype(compute_dtype)
        self.w_t = w_t

    def __call__(self, x):
        return nonlinear_forward(
            x, self.w_t, self.bias, self.activation,
            compute_dtype=self.compute_dtype,
        )


if __name__ == "__main__":
    key = jax.random.PRNGKey(0)
    k_in, k_mod, k_x2 = jax.random.split(key, 3)

    # --- Case 1: small layer -> single-block fast path (fused dot+bias+tanh) ---
    batch, input_size, output_size = 8, 256, 128
    x = jax.random.normal(k_in, (batch, input_size), jnp.float32)
    module = NonLinearPallas(input_size, output_size, bias=True,
                             activation=jnp.tanh, key=k_mod)
    out = jax.block_until_ready(module(x))
    ref = jnp.tanh(x @ module.weight.T + module.bias)
    assert out.shape == (batch, output_size)
    assert jnp.allclose(out, ref, atol=1e-5, rtol=1e-5)

    # --- Case 2: tiled path with K-reduction grid, ragged shapes (padding) ---
    M2, K2, N2 = 24, 384, 200  # non-multiples of tiles -> exercises padding
    x2 = jax.random.normal(k_x2, (M2, K2), jnp.float32)
    w2 = jax.random.normal(jax.random.PRNGKey(7), (N2, K2), jnp.float32) * 0.05
    b2 = jax.random.normal(jax.random.PRNGKey(8), (N2,), jnp.float32) * 0.05
    # Small explicit tiles purely to exercise the multi-step tiled path at
    # test-friendly shapes; production defaults are 256/512/1024.
    out2 = nonlinear_forward(x2, w2.T, b2, jnp.tanh, tm=8, tn=128, tk=128)
    out2 = jax.block_until_ready(out2)
    ref2 = jnp.tanh(x2 @ w2.T + b2)
    assert out2.shape == (M2, N2)
    assert jnp.allclose(out2, ref2, atol=1e-5, rtol=1e-5)

    # --- Case 3: bf16 compute dtype (f32 accumulation + f32 epilogue) ---
    module_bf16 = NonLinearPallas(input_size, output_size, bias=True,
                                  activation=jnp.tanh, key=k_mod,
                                  compute_dtype=jnp.bfloat16)
    out3 = jax.block_until_ready(module_bf16(x))
    ref3 = jnp.tanh(
        x.astype(jnp.bfloat16).astype(jnp.float32)
        @ module_bf16.w_t.astype(jnp.float32)
        + module_bf16.bias
    )
    assert out3.dtype == x.dtype
    assert jnp.allclose(out3, ref3, atol=1e-3, rtol=1e-3)

    print("KERNEL_OK")
</pallas_src>

<mosaic_0001>
module attributes {stable_mosaic.version = 11 : i64} {
  func.func @_nonlinear_small_kernel(%arg0: i32, %arg1: memref<8x256xf32, #tpu.memory_space<vmem>>, %arg2: memref<256x128xf32, #tpu.memory_space<vmem>>, %arg3: memref<1x128xf32, #tpu.memory_space<vmem>>, %arg4: memref<8x128xf32, #tpu.memory_space<vmem>>) attributes {dimension_semantics = [#tpu.dimension_semantics<arbitrary>], iteration_bounds = array<i64: 1>, scalar_prefetch = 0 : i64, scratch_operands = 0 : i64, tpu.core_type = #tpu.core_type<tc>, window_params = [{pipeline_mode = #tpu.pipeline_mode<synchronous>, transform_indices = @transform_0, window_bounds = array<i64: 8, 256>}, {pipeline_mode = #tpu.pipeline_mode<synchronous>, transform_indices = @transform_1, window_bounds = array<i64: 256, 128>}, {pipeline_mode = #tpu.pipeline_mode<synchronous>, transform_indices = @transform_2, window_bounds = array<i64: 1, 128>}, {pipeline_mode = #tpu.pipeline_mode<synchronous>, transform_indices = @transform_3, window_bounds = array<i64: 8, 128>}]} {
    %c0 = arith.constant 0 : index
    %c0_0 = arith.constant 0 : index
    %0 = vector.load %arg1[%c0, %c0_0] : memref<8x256xf32, #tpu.memory_space<vmem>>, vector<8x256xf32>
    %c0_1 = arith.constant 0 : index
    %c0_2 = arith.constant 0 : index
    %1 = vector.load %arg2[%c0_1, %c0_2] : memref<256x128xf32, #tpu.memory_space<vmem>>, vector<256x128xf32>
    %cst = arith.constant dense<0.000000e+00> : vector<8x128xf32>
    %2 = tpu.matmul %0, %1, %cst {dimension_numbers = #tpu.dot_dimension_numbers<[1], [0], [0], [1], [0, 0, 1, 1], [], []>} : vector<8x256xf32>, vector<256x128xf32>, vector<8x128xf32> -> vector<8x128xf32>
    %c0_3 = arith.constant 0 : index
    %c0_4 = arith.constant 0 : index
    %3 = vector.load %arg3[%c0_3, %c0_4] : memref<1x128xf32, #tpu.memory_space<vmem>>, vector<1x128xf32>
    %4 = vector.broadcast %3 : vector<1x128xf32> to vector<8x128xf32>
    %5 = arith.addf %2, %4 : vector<8x128xf32>
    %6 = math.tanh %5 : vector<8x128xf32>
    %c0_5 = arith.constant 0 : index
    %c0_6 = arith.constant 0 : index
    %7 = vector.load %arg4[%c0_5, %c0_6] : memref<8x128xf32, #tpu.memory_space<vmem>>, vector<8x128xf32>
    tpu.vector_store %arg4[%c0_5, %c0_6], %6 {strides = array<i32>} : memref<8x128xf32, #tpu.memory_space<vmem>>, vector<8x128xf32>,
    return
  }
  func.func @transform_0(%arg0: i32) -> (i32, i32) {
    %c0_i32 = arith.constant 0 : i32
    %c0_i32_0 = arith.constant 0 : i32
    %c0_i32_1 = arith.constant 0 : i32
    return %c0_i32, %c0_i32_0 : i32, i32
  }
  func.func @transform_1(%arg0: i32) -> (i32, i32) {
    %c0_i32 = arith.constant 0 : i32
    %c0_i32_0 = arith.constant 0 : i32
    %c0_i32_1 = arith.constant 0 : i32
    return %c0_i32, %c0_i32_0 : i32, i32
  }
  func.func @transform_2(%arg0: i32) -> (i32, i32) {
    %c0_i32 = arith.constant 0 : i32
    %c0_i32_0 = arith.constant 0 : i32
    %c0_i32_1 = arith.constant 0 : i32
    return %c0_i32, %c0_i32_0 : i32, i32
  }
  func.func @transform_3(%arg0: i32) -> (i32, i32) {
    %c0_i32 = arith.constant 0 : i32
    %c0_i32_0 = arith.constant 0 : i32
    %c0_i32_1 = arith.constant 0 : i32
    return %c0_i32, %c0_i32_0 : i32, i32
  }
}

</mosaic_0001>

<llo_original>
// kernel: tpu_custom_call.1
$region0: #{tpu_custom_call.1}
  #allocation0 [shape = 'u32[]', space=smem, size = 0x4, offset = 0x4, fixed_abs, tag = 'smem constant byte address 0x4 - core index']
  #allocation1 [shape = 'u32[144,128]{1,0:T(1,128)}', space=vmem, size = 0x12000, scoped, tag = 'internal scratch']
  %s0 = inlined_call_operand.hbm [shape: f32[8,256], index: 0, kind: input, shape index: {}]
  %s1 = inlined_call_operand.hbm [shape: f32[256,128], index: 1, kind: input, shape index: {}]
  %s2 = inlined_call_operand.vmem [shape: f32[1,128], index: 2, kind: input, shape index: {}]
  %s3 = inlined_call_operand.hbm [shape: f32[8,128], index: 3, kind: output, shape index: {}]
  %s4 = sld [smem:[#allocation0]]
  $region30: #{tpu_custom_call.1} parent=0
    _
  %s6 = ssub.s32 1, %s4
  %s7 = scalar_select 0, %s6, %s4
  $region1: #{tpu_custom_call.1} parent=0
    #allocation2 [shape = 'u8[8192]{0}', space=vmem, size = 0x2000, scoped, tag = 'input window, operand 0, single buffered']
    #allocation3 [shape = 's32[1]{0}', space=sflag, size = 0x4, scoped, tag = 'scoped memory for tpu_custom_call.1']
    #allocation4 [shape = 's32[1]{0}', space=sflag, size = 0x4, scoped, tag = 'scoped memory for tpu_custom_call.1']
    #allocation5 [shape = 'u8[131072]{0}', space=vmem, size = 0x20000, scoped, tag = 'input window, operand 1, single buffered']
    #allocation6 [shape = 's32[1]{0}', space=sflag, size = 0x4, scoped, tag = 'scoped memory for tpu_custom_call.1']
    #allocation7 [shape = 'u8[4096]{0}', space=vmem, size = 0x1000, scoped, tag = 'output window, operand 0, single buffered']
    %8 = vsyncpa [#allocation3], 0
    %9 = vsyncpa [#allocation6], 0
    %10 = vsyncpa [#allocation4], 0
    // Predicated region
    $region2: #{tpu_custom_call.1} parent=1 // pred_check
      _
    $region3: #{tpu_custom_call.1} parent=1 // pred_check_branch
      %12 = sbr.rel (0) target = $region5
    $region4: #{tpu_custom_call.1} parent=1 // pred_region
      %s14 = ssub.s32 256, 256
      %15 = vsyncadd [#allocation3], %s14
      %s17 = sshll.u32 [#allocation2], 4
      %s18 = int_to_ptr.vmem [resolvable:$true] %s17
      %20 = dma.hbm_to_vmem [thread:$0]  %s0, 256, %s18, [#allocation3]
    $region5: #{tpu_custom_call.1} parent=1 // pred_fallthru
      _
    // Predicated region
    $region6: #{tpu_custom_call.1} parent=1 // pred_check
      _
    $region7: #{tpu_custom_call.1} parent=1 // pred_check_branch
      %22 = sbr.rel (0) target = $region9
    $region8: #{tpu_custom_call.1} parent=1 // pred_region
      %s24 = ssub.s32 4096, 4096
      %25 = vsyncadd [#allocation6], %s24
      %s26 = sshll.u32 [#allocation5], 4
      %s27 = int_to_ptr.vmem [resolvable:$true] %s26
      %32 = dma.hbm_to_vmem [thread:$0]  %s1, 4096, %s27, [#allocation6], 128, 128, 8
    $region9: #{tpu_custom_call.1} parent=1 // pred_fallthru
      _
    // Predicated region
    $region10: #{tpu_custom_call.1} parent=1 // pred_check
      _
    $region11: #{tpu_custom_call.1} parent=1 // pred_check_branch
      %34 = sbr.rel (0) target = $region13
    $region12: #{tpu_custom_call.1} parent=1 // pred_region
      _
    $region13: #{tpu_custom_call.1} parent=1 // pred_fallthru
      _
    // Predicated region
    $region14: #{tpu_custom_call.1} parent=1 // pred_check
      _
    $region15: #{tpu_custom_call.1} parent=1 // pred_check_branch
      %36 = sbr.rel (0) target = $region17
    $region16: #{tpu_custom_call.1} parent=1 // pred_region
      %37 = dma.done [#allocation3], 256
    $region17: #{tpu_custom_call.1} parent=1 // pred_fallthru
      _
    // Predicated region
    $region18: #{tpu_custom_call.1} parent=1 // pred_check
      _
    $region19: #{tpu_custom_call.1} parent=1 // pred_check_branch
      %39 = sbr.rel (0) target = $region21
    $region20: #{tpu_custom_call.1} parent=1 // pred_region
      %40 = dma.done [#allocation6], 4096
    $region21: #{tpu_custom_call.1} parent=1 // pred_fallthru
      _
    %v41 = vld [vmem:[#allocation2] sm:$0xff]
    %v42 = vld [vmem:[#allocation2 + $0x8] sm:$0xff]
    %v43 = vld [vmem:[#allocation5] sm:$0xff]
    %v44 = vld [vmem:[#allocation5 + $0x8] sm:$0xff]
    %v45 = vld [vmem:[#allocation5 + $0x10] sm:$0xff]
    %v46 = vld [vmem:[#allocation5 + $0x18] sm:$0xff]
    %v47 = vld [vmem:[#allocation5 + $0x20] sm:$0xff]
    %v48 = vld [vmem:[#allocation5 + $0x28] sm:$0xff]
    %v49 = vld [vmem:[#allocation5 + $0x30] sm:$0xff]
    %v50 = vld [vmem:[#allocation5 + $0x38] sm:$0xff]
    %v51 = vld [vmem:[#allocation5 + $0x40] sm:$0xff]
    %v52 = vld [vmem:[#allocation5 + $0x48] sm:$0xff]
    %v53 = vld [vmem:[#allocation5 + $0x50] sm:$0xff]
    %v54 = vld [vmem:[#allocation5 + $0x58] sm:$0xff]
    %v55 = vld [vmem:[#allocation5 + $0x60] sm:$0xff]
    %v56 = vld [vmem:[#allocation5 + $0x68] sm:$0xff]
    %v57 = vld [vmem:[#allocation5 + $0x70] sm:$0xff]
    %v58 = vld [vmem:[#allocation5 + $0x78] sm:$0xff]
    %v59 = vld [vmem:[#allocation5 + $0x80] sm:$0xff]
    %v60 = vld [vmem:[#allocation5 + $0x88] sm:$0xff]
    %v61 = vld [vmem:[#allocation5 + $0x90] sm:$0xff]
    %v62 = vld [vmem:[#allocation5 + $0x98] sm:$0xff]
    %v63 = vld [vmem:[#allocation5 + $0xa0] sm:$0xff]
    %v64 = vld [vmem:[#allocation5 + $0xa8] sm:$0xff]
    %v65 = vld [vmem:[#allocation5 + $0xb0] sm:$0xff]
    %v66 = vld [vmem:[#allocation5 + $0xb8] sm:$0xff]
    %v67 = vld [vmem:[#allocation5 + $0xc0] sm:$0xff]
    %v68 = vld [vmem:[#allocation5 + $0xc8] sm:$0xff]
    %v69 = vld [vmem:[#allocation5 + $0xd0] sm:$0xff]
    %v70 = vld [vmem:[#allocation5 + $0xd8] sm:$0xff]
    %v71 = vld [vmem:[#allocation5 + $0xe0] sm:$0xff]
    %v72 = vld [vmem:[#allocation5 + $0xe8] sm:$0xff]
    %v73 = vld [vmem:[#allocation5 + $0xf0] sm:$0xff]
    %v74 = vld [vmem:[#allocation5 + $0xf8] sm:$0xff]
    %v75 = vld [vmem:[%s2] sm:$0x1]
    %v77 = vlaneseq
    %v78 = vshrl.u32 %v77, 7
    %v79 = vsub.s32 0, %v78
    %v80 = vrot.slane %v75, %v79
    %82 = vmatprep.subr.mxu0 0.0
    %83 = vmatpush1.msra.mxu0 %v43
    %84 = vmatprep.subr.mxu0 0.0
    %85 = vmatpush1.msra.mxu0 %v44
    %86 = vmatprep.subr.mxu0 0.0
    %87 = vmatpush1.msra.mxu0 %v45
    %88 = vmatprep.subr.mxu0 0.0
    %89 = vmatpush1.msra.mxu0 %v46
    %90 = vmatprep.subr.mxu0 0.0
    %91 = vmatpush1.msra.mxu0 %v47
    %92 = vmatprep.subr.mxu0 0.0
    %93 = vmatpush1.msra.mxu0 %v48
    %94 = vmatprep.subr.mxu0 0.0
    %95 = vmatpush1.msra.mxu0 %v49
    %96 = vmatprep.subr.mxu0 0.0
    %97 = vmatpush1.msra.mxu0 %v50
    %98 = vmatprep.subr.mxu0 0.0
    %99 = vmatpush1.msra.mxu0 %v51
    %100 = vmatprep.subr.mxu0 0.0
    %101 = vmatpush1.msra.mxu0 %v52
    %102 = vmatprep.subr.mxu0 0.0
    %103 = vmatpush1.msra.mxu0 %v53
    %104 = vmatprep.subr.mxu0 0.0
    %105 = vmatpush1.msra.mxu0 %v54
    %106 = vmatprep.subr.mxu0 0.0
    %107 = vmatpush1.msra.mxu0 %v55
    %108 = vmatprep.subr.mxu0 0.0
    %109 = vmatpush1.msra.mxu0 %v56
    %110 = vmatprep.subr.mxu0 0.0
    %111 = vmatpush1.msra.mxu0 %v57
    %112 = vmatprep.subr.mxu0 0.0
    %113 = vmatpush1.msra.mxu0 %v58
    %114 = vmatprep.subr.mxu0 0.0
    %115 = vmatpush1.msra.mxu0 %v59
    %116 = vmatprep.subr.mxu0 0.0
    %117 = vmatpush1.msra.mxu0 %v60
    %118 = vmatprep.subr.mxu0 0.0
    %119 = vmatpush1.msra.mxu0 %v61
    %120 = vmatprep.subr.mxu0 0.0
    %121 = vmatpush1.msra.mxu0 %v62
    %122 = vmatprep.subr.mxu0 0.0
    %123 = vmatpush1.msra.mxu0 %v63
    %124 = vmatprep.subr.mxu0 0.0
    %125 = vmatpush1.msra.mxu0 %v64
    %126 = vmatprep.subr.mxu0 0.0
    %127 = vmatpush1.msra.mxu0 %v65
    %128 = vmatprep.subr.mxu0 0.0
    %129 = vmatpush1.msra.mxu0 %v66
    %130 = vmatprep.subr.mxu0 0.0
    %131 = vmatpush1.msra.mxu0 %v67
    %132 = vmatprep.subr.mxu0 0.0
    %133 = vmatpush1.msra.mxu0 %v68
    %134 = vmatprep.subr.mxu0 0.0
    %135 = vmatpush1.msra.mxu0 %v69
    %136 = vmatprep.subr.mxu0 0.0
    %137 = vmatpush1.msra.mxu0 %v70
    %138 = vmatprep.subr.mxu0 0.0
    %139 = vmatpush1.msra.mxu0 %v71
    %140 = vmatprep.subr.mxu0 0.0
    %141 = vmatpush1.msra.mxu0 %v72
    %142 = vmatprep.subr.mxu0 0.0
    %143 = vmatpush1.msra.mxu0 %v73
    %144 = vmatprep.subr.mxu0 0.0
    %145 = vmatpush1.msra.mxu0 %v74
    %146 = vmatprep.mubr.f32.mxu0 %v42
    %147 = vmatmul.mubr.f32.gmra.mrb[0].mxu0 %v41
    %v148 = vpop.f32.mrb[0].mxu0
    %v149 = vadd.f32 %v80, %v148
    %v150 = vpop.f32.mrb[0].mxu0
    %151 = vdwg.mxu0
    %v152 = vtanh.pop %v149
    %153 = vst [vmem:[#allocation7] sm:$0xff] %v152
    // Predicated region
    $region22: #{tpu_custom_call.1} parent=1 // pred_check
      _
    $region23: #{tpu_custom_call.1} parent=1 // pred_check_branch
      %155 = sbr.rel (0) target = $region25
    $region24: #{tpu_custom_call.1} parent=1 // pred_region
      %s157 = ssub.s32 128, 128
      %158 = vsyncadd [#allocation4], %s157
      %s160 = sshll.u32 [#allocation7], 4
      %s161 = int_to_ptr.vmem [resolvable:$true] %s160
      %163 = dma.vmem_to_hbm [thread:$0]  %s161, 128, %s3, [#allocation4]
    $region25: #{tpu_custom_call.1} parent=1 // pred_fallthru
      _
    // Predicated region
    $region26: #{tpu_custom_call.1} parent=1 // pred_check
      _
    $region27: #{tpu_custom_call.1} parent=1 // pred_check_branch
      %165 = sbr.rel (0) target = $region29
    $region28: #{tpu_custom_call.1} parent=1 // pred_region
      %166 = dma.done [#allocation4], 128
    $region29: #{tpu_custom_call.1} parent=1 // pred_fallthru
      _
    %167 = vsyncpa [#allocation3], 1
    %168 = vsyncpa [#allocation6], 1
    %169 = vsyncpa [#allocation4], 1

</llo_original>
